<compile_context>
chip_gen: v5e
topology: v5e:2x2
jax: 0.10.0
libtpu: 0.0.40
codegen_flags: <defaults>
</compile_context>

<pallas_src>
import jax
import jax.numpy as jnp
from jax import lax
from jax.experimental import pallas as pl
from jax.experimental.pallas import tpu as pltpu

C_PAD = 128  # lane-dense classifier width


def bert_classifier_kernel(vl_ref, h_ref, wp_ref, bp_ref, wc_ref, bc_ref,
                           out_ref, acc_ref, cnt_ref):
    TB, TS, H = h_ref.shape
    s = pl.program_id(1)

    @pl.when(s == 0)
    def _init():
        acc_ref[...] = jnp.zeros_like(acc_ref)
        cnt_ref[...] = jnp.zeros_like(cnt_ref)

    # gen_attention_mask for this (TB, TS) tile:
    #   attention_mask[i, p] = 1  iff  (s*TS + p) < valid_length[i]
    pos = lax.broadcasted_iota(jnp.int32, (TB, TS), 1) + s * TS
    mask = (pos < vl_ref[...]).astype(jnp.float32)               # (TB, TS)

    # Masked-sum pooling: bf16 stream, f32 accumulate.
    h = h_ref[...].astype(jnp.float32)                           # (TB, TS, H)
    acc_ref[...] += jnp.sum(h * mask[:, :, None], axis=1)        # (TB, H)
    cnt_ref[...] += jnp.sum(mask, axis=1, keepdims=True)         # (TB, 1)

    @pl.when(s == pl.num_programs(1) - 1)
    def _epilogue():
        denom = jnp.maximum(cnt_ref[...], 1.0)                   # guard vl == 0
        pooled = acc_ref[...] * pl.reciprocal(denom, approx=True)

        # BERT pooler head: tanh(W_p x + b_p)   (bf16 operands -> f32 acc).
        pooler = jnp.tanh(
            jnp.dot(pooled.astype(jnp.bfloat16), wp_ref[...],
                    preferred_element_type=jnp.float32) + bp_ref[...])

        # TODO(synk): dropout reproduced in eval mode (identity); training-mode
        # stochastic dropout would use pltpu.prng_seed / pltpu.prng_random_bits.

        # classifier: Linear(hidden_size, num_classes), lane-padded columns.
        out_ref[...] = (
            jnp.dot(pooler.astype(jnp.bfloat16), wc_ref[...],
                    preferred_element_type=jnp.float32) + bc_ref[...])


def _pad_axis(x, target, axis):
    pad = target - x.shape[axis]
    if pad <= 0:
        return x
    widths = [(0, 0)] * x.ndim
    widths[axis] = (0, pad)
    return jnp.pad(x, widths)


def bert_classifier_forward(token_ids, valid_length, segment_ids, params,
                            *, tb=8, ts=128):
    B, S = token_ids.shape
    H = params["tok_emb"].shape[1]
    C = params["wc"].shape[1]

    # Embedding gathers stay in plain JAX glue (stand-in for the external
    # pretrained BERT encoder injected into the PyTorch module).
    hidden = (params["tok_emb"][token_ids]
              + params["seg_emb"][segment_ids]
              + params["pos_emb"][None, :S, :])
    # Stream the big (B, S, H) tensor as bf16 (halves HBM traffic); the kernel
    # upcasts per tile and accumulates in f32.
    hidden = hidden.astype(jnp.bfloat16)

    TB = tb
    TS = S if S <= ts else ts          # sequence tile (8-divisible or full S)
    B_pad = pl.cdiv(B, TB) * TB
    S_pad = pl.cdiv(S, TS) * TS

    hidden = _pad_axis(_pad_axis(hidden, B_pad, 0), S_pad, 1)
    vl = _pad_axis(valid_length.astype(jnp.int32).reshape(B, 1), B_pad, 0)

    wp = params["wp"].astype(jnp.bfloat16)                        # (H, H)
    bp = params["bp"].astype(jnp.float32)                         # (1, H)
    wc = _pad_axis(params["wc"], C_PAD, 1).astype(jnp.bfloat16)   # (H, 128)
    bc = _pad_axis(params["bc"], C_PAD, 1).astype(jnp.float32)    # (1, 128)

    grid = (B_pad // TB, S_pad // TS)

    logits_pad = pl.pallas_call(
        bert_classifier_kernel,
        out_shape=jax.ShapeDtypeStruct((B_pad, C_PAD), jnp.float32),
        grid_spec=pltpu.PrefetchScalarGridSpec(
            num_scalar_prefetch=0,
            grid=grid,
            in_specs=[
                pl.BlockSpec((TB, 1), lambda b, s: (b, 0)),         # valid_length
                pl.BlockSpec((TB, TS, H), lambda b, s: (b, s, 0)),  # hidden (streamed)
                pl.BlockSpec((H, H), lambda b, s: (0, 0)),          # wp (resident)
                pl.BlockSpec((1, H), lambda b, s: (0, 0)),          # bp
                pl.BlockSpec((H, C_PAD), lambda b, s: (0, 0)),      # wc (lane-padded)
                pl.BlockSpec((1, C_PAD), lambda b, s: (0, 0)),      # bc
            ],
            out_specs=pl.BlockSpec((TB, C_PAD), lambda b, s: (b, 0)),
            scratch_shapes=[
                pltpu.VMEM((TB, H), jnp.float32),   # masked-sum accumulator
                pltpu.VMEM((TB, 1), jnp.float32),   # valid-token count
            ]),
        compiler_params=pltpu.CompilerParams(
            dimension_semantics=("parallel", "arbitrary")),
    )(vl, hidden, wp, bp, wc, bc)

    return logits_pad[:B, :C]


def _reference_forward(token_ids, valid_length, segment_ids, params):
    """Pure-JAX f32 reference with the same semantics (masked-mean pooler)."""
    B, S = token_ids.shape
    hidden = (params["tok_emb"][token_ids]
              + params["seg_emb"][segment_ids]
              + params["pos_emb"][None, :S, :]).astype(jnp.float32)
    pos = jnp.arange(S)[None, :]
    mask = (pos < valid_length.astype(jnp.int32)[:, None]).astype(jnp.float32)
    summed = jnp.sum(hidden * mask[:, :, None], axis=1)
    denom = jnp.maximum(jnp.sum(mask, axis=1, keepdims=True), 1.0)
    pooled = summed / denom
    pooler = jnp.tanh(pooled @ params["wp"] + params["bp"])
    return pooler @ params["wc"] + params["bc"]


def init_params(key, vocab_size, max_seq, hidden_size, num_classes):
    ks = jax.random.split(key, 6)
    scale = 0.1
    return {
        "tok_emb": scale * jax.random.normal(ks[0], (vocab_size, hidden_size), jnp.float32),
        "seg_emb": scale * jax.random.normal(ks[1], (2, hidden_size), jnp.float32),
        "pos_emb": scale * jax.random.normal(ks[2], (max_seq, hidden_size), jnp.float32),
        # BERT pooler dense (hidden_size -> hidden_size)
        "wp": scale * jax.random.normal(ks[3], (hidden_size, hidden_size), jnp.float32),
        "bp": jnp.zeros((1, hidden_size), jnp.float32),
        # classifier = nn.Linear(hidden_size, num_classes)
        "wc": scale * jax.random.normal(ks[4], (hidden_size, num_classes), jnp.float32),
        "bc": jnp.zeros((1, num_classes), jnp.float32),
    }


if __name__ == "__main__":
    B, S, H, C, V = 2, 8, 32, 7, 50

    key = jax.random.PRNGKey(0)
    k_tok, k_seg, k_par = jax.random.split(key, 3)

    token_ids = jax.random.randint(k_tok, (B, S), 0, V, dtype=jnp.int32)
    segment_ids = jax.random.randint(k_seg, (B, S), 0, 2, dtype=jnp.int32)
    valid_length = jnp.array([5, 8], dtype=jnp.int32)

    params = init_params(k_par, V, S, H, C)

    logits = bert_classifier_forward(token_ids, valid_length, segment_ids, params)
    logits = jax.block_until_ready(logits)

    assert logits.shape == (B, C) and logits.dtype == jnp.float32
    assert bool(jnp.all(jnp.isfinite(logits)))

    ref = _reference_forward(token_ids, valid_length, segment_ids, params)
    # bf16 streaming + approx reciprocal -> loose but bug-catching tolerance.
    assert bool(jnp.allclose(logits, ref, atol=3e-3, rtol=5e-2)), (logits, ref)

    print("KERNEL_OK")
</pallas_src>

<mosaic_0001>
module attributes {stable_mosaic.version = 11 : i64} {
  func.func @bert_classifier_kernel(%arg0: i32, %arg1: i32, %arg2: memref<8x1xi32, #tpu.memory_space<vmem>>, %arg3: memref<8x8x32xbf16, #tpu.memory_space<vmem>>, %arg4: memref<32x32xbf16, #tpu.memory_space<vmem>>, %arg5: memref<1x32xf32, #tpu.memory_space<vmem>>, %arg6: memref<32x128xbf16, #tpu.memory_space<vmem>>, %arg7: memref<1x128xf32, #tpu.memory_space<vmem>>, %arg8: memref<8x128xf32, #tpu.memory_space<vmem>>, %arg9: memref<8x32xf32, #tpu.memory_space<vmem>>, %arg10: memref<8x1xf32, #tpu.memory_space<vmem>>) attributes {dimension_semantics = [#tpu.dimension_semantics<parallel>, #tpu.dimension_semantics<arbitrary>], iteration_bounds = array<i64: 1, 1>, scalar_prefetch = 0 : i64, scratch_operands = 2 : i64, tpu.core_type = #tpu.core_type<tc>, window_params = [{transform_indices = @transform_0, window_bounds = array<i64: 8, 1>}, {transform_indices = @transform_1, window_bounds = array<i64: 8, 8, 32>}, {pipeline_mode = #tpu.pipeline_mode<synchronous>, transform_indices = @transform_2, window_bounds = array<i64: 32, 32>}, {pipeline_mode = #tpu.pipeline_mode<synchronous>, transform_indices = @transform_3, window_bounds = array<i64: 1, 32>}, {pipeline_mode = #tpu.pipeline_mode<synchronous>, transform_indices = @transform_4, window_bounds = array<i64: 32, 128>}, {pipeline_mode = #tpu.pipeline_mode<synchronous>, transform_indices = @transform_5, window_bounds = array<i64: 1, 128>}, {transform_indices = @transform_6, window_bounds = array<i64: 8, 128>}]} {
    %c0_i32 = arith.constant 0 : i32
    %0 = arith.cmpi eq, %arg1, %c0_i32 : i32
    %1 = arith.extui %0 : i1 to i32
    %c0_i32_0 = arith.constant 0 : i32
    %2 = arith.cmpi ne, %1, %c0_i32_0 : i32
    scf.if %2 {
      %cst_16 = arith.constant 0.000000e+00 : f32
      %29 = vector.broadcast %cst_16 : f32 to vector<8x32xf32>
      %c0_17 = arith.constant 0 : index
      %c0_18 = arith.constant 0 : index
      %30 = vector.load %arg9[%c0_17, %c0_18] : memref<8x32xf32, #tpu.memory_space<vmem>>, vector<8x32xf32>
      tpu.vector_store %arg9[%c0_17, %c0_18], %29 {strides = array<i32>} : memref<8x32xf32, #tpu.memory_space<vmem>>, vector<8x32xf32>,
      %cst_19 = arith.constant 0.000000e+00 : f32
      %31 = vector.broadcast %cst_19 : f32 to vector<8x1xf32>
      %c0_20 = arith.constant 0 : index
      %c0_21 = arith.constant 0 : index
      %32 = vector.load %arg10[%c0_20, %c0_21] : memref<8x1xf32, #tpu.memory_space<vmem>>, vector<8x1xf32>
      tpu.vector_store %arg10[%c0_20, %c0_21], %31 {strides = array<i32>} : memref<8x1xf32, #tpu.memory_space<vmem>>, vector<8x1xf32>,
    } else {
    }
    %3 = tpu.iota {dimensions = array<i32: 1>} : vector<8x8xi32>
    %c8_i32 = arith.constant 8 : i32
    %4 = arith.muli %arg1, %c8_i32 : i32
    %5 = vector.broadcast %4 : i32 to vector<8x8xi32>
    %6 = arith.addi %3, %5 : vector<8x8xi32>
    %c0 = arith.constant 0 : index
    %c0_1 = arith.constant 0 : index
    %7 = vector.load %arg2[%c0, %c0_1] : memref<8x1xi32, #tpu.memory_space<vmem>>, vector<8x1xi32>
    %8 = vector.broadcast %7 : vector<8x1xi32> to vector<8x8xi32>
    %9 = arith.cmpi slt, %6, %8 : vector<8x8xi32>
    %10 = arith.extui %9 : vector<8x8xi1> to vector<8x8xi32>
    %11 = arith.sitofp %10 : vector<8x8xi32> to vector<8x8xf32>
    %c0_2 = arith.constant 0 : index
    %c0_3 = arith.constant 0 : index
    %c0_4 = arith.constant 0 : index
    %12 = vector.load %arg3[%c0_2, %c0_3, %c0_4] : memref<8x8x32xbf16, #tpu.memory_space<vmem>>, vector<8x8x32xbf16>
    %13 = arith.extf %12 : vector<8x8x32xbf16> to vector<8x8x32xf32>
    %c0_5 = arith.constant 0 : index
    %c0_6 = arith.constant 0 : index
    %14 = vector.load %arg9[%c0_5, %c0_6] : memref<8x32xf32, #tpu.memory_space<vmem>>, vector<8x32xf32>
    %15 = vector.shape_cast %11 : vector<8x8xf32> to vector<8x8x1xf32>
    %16 = vector.broadcast %15 : vector<8x8x1xf32> to vector<8x8x32xf32>
    %17 = arith.mulf %13, %16 : vector<8x8x32xf32>
    %cst = arith.constant dense<0.000000e+00> : vector<8x32xf32>
    %18 = vector.multi_reduction <add>, %17, %cst [1] : vector<8x8x32xf32> to vector<8x32xf32>
    %19 = arith.addf %14, %18 : vector<8x32xf32>
    %c0_7 = arith.constant 0 : index
    %c0_8 = arith.constant 0 : index
    %20 = vector.load %arg9[%c0_7, %c0_8] : memref<8x32xf32, #tpu.memory_space<vmem>>, vector<8x32xf32>
    tpu.vector_store %arg9[%c0_7, %c0_8], %19 {strides = array<i32>} : memref<8x32xf32, #tpu.memory_space<vmem>>, vector<8x32xf32>,
    %c0_9 = arith.constant 0 : index
    %c0_10 = arith.constant 0 : index
    %21 = vector.load %arg10[%c0_9, %c0_10] : memref<8x1xf32, #tpu.memory_space<vmem>>, vector<8x1xf32>
    %cst_11 = arith.constant dense<0.000000e+00> : vector<8xf32>
    %22 = vector.multi_reduction <add>, %11, %cst_11 [1] : vector<8x8xf32> to vector<8xf32>
    %23 = vector.shape_cast %22 : vector<8xf32> to vector<8x1xf32>
    %24 = arith.addf %21, %23 : vector<8x1xf32>
    %c0_12 = arith.constant 0 : index
    %c0_13 = arith.constant 0 : index
    %25 = vector.load %arg10[%c0_12, %c0_13] : memref<8x1xf32, #tpu.memory_space<vmem>>, vector<8x1xf32>
    tpu.vector_store %arg10[%c0_12, %c0_13], %24 {strides = array<i32>} : memref<8x1xf32, #tpu.memory_space<vmem>>, vector<8x1xf32>,
    %c0_i32_14 = arith.constant 0 : i32
    %26 = arith.cmpi eq, %arg1, %c0_i32_14 : i32
    %27 = arith.extui %26 : i1 to i32
    %c0_i32_15 = arith.constant 0 : i32
    %28 = arith.cmpi ne, %27, %c0_i32_15 : i32
    scf.if %28 {
      %c0_16 = arith.constant 0 : index
      %c0_17 = arith.constant 0 : index
      %29 = vector.load %arg10[%c0_16, %c0_17] : memref<8x1xf32, #tpu.memory_space<vmem>>, vector<8x1xf32>
      %cst_18 = arith.constant 1.000000e+00 : f32
      %30 = vector.broadcast %cst_18 : f32 to vector<8x1xf32>
      %31 = arith.maximumf %29, %30 : vector<8x1xf32>
      %c0_19 = arith.constant 0 : index
      %c0_20 = arith.constant 0 : index
      %32 = vector.load %arg9[%c0_19, %c0_20] : memref<8x32xf32, #tpu.memory_space<vmem>>, vector<8x32xf32>
      %33 = tpu.reciprocal %31 {approx = true} : vector<8x1xf32> -> vector<8x1xf32>
      %34 = vector.broadcast %33 : vector<8x1xf32> to vector<8x32xf32>
      %35 = arith.mulf %32, %34 : vector<8x32xf32>
      %36 = arith.truncf %35 : vector<8x32xf32> to vector<8x32xbf16>
      %c0_21 = arith.constant 0 : index
      %c0_22 = arith.constant 0 : index
      %37 = vector.load %arg4[%c0_21, %c0_22] : memref<32x32xbf16, #tpu.memory_space<vmem>>, vector<32x32xbf16>
      %cst_23 = arith.constant dense<0.000000e+00> : vector<8x32xf32>
      %38 = tpu.matmul %36, %37, %cst_23 {dimension_numbers = #tpu.dot_dimension_numbers<[1], [0], [0], [1], [0, 0, 1, 1], [], []>} : vector<8x32xbf16>, vector<32x32xbf16>, vector<8x32xf32> -> vector<8x32xf32>
      %c0_24 = arith.constant 0 : index
      %c0_25 = arith.constant 0 : index
      %39 = vector.load %arg5[%c0_24, %c0_25] : memref<1x32xf32, #tpu.memory_space<vmem>>, vector<1x32xf32>
      %40 = vector.broadcast %39 : vector<1x32xf32> to vector<8x32xf32>
      %41 = arith.addf %38, %40 : vector<8x32xf32>
      %42 = math.tanh %41 : vector<8x32xf32>
      %43 = arith.truncf %42 : vector<8x32xf32> to vector<8x32xbf16>
      %c0_26 = arith.constant 0 : index
      %c0_27 = arith.constant 0 : index
      %44 = vector.load %arg6[%c0_26, %c0_27] : memref<32x128xbf16, #tpu.memory_space<vmem>>, vector<32x128xbf16>
      %cst_28 = arith.constant dense<0.000000e+00> : vector<8x128xf32>
      %45 = tpu.matmul %43, %44, %cst_28 {dimension_numbers = #tpu.dot_dimension_numbers<[1], [0], [0], [1], [0, 0, 1, 1], [], []>} : vector<8x32xbf16>, vector<32x128xbf16>, vector<8x128xf32> -> vector<8x128xf32>
      %c0_29 = arith.constant 0 : index
      %c0_30 = arith.constant 0 : index
      %46 = vector.load %arg7[%c0_29, %c0_30] : memref<1x128xf32, #tpu.memory_space<vmem>>, vector<1x128xf32>
      %47 = vector.broadcast %46 : vector<1x128xf32> to vector<8x128xf32>
      %48 = arith.addf %45, %47 : vector<8x128xf32>
      %c0_31 = arith.constant 0 : index
      %c0_32 = arith.constant 0 : index
      %49 = vector.load %arg8[%c0_31, %c0_32] : memref<8x128xf32, #tpu.memory_space<vmem>>, vector<8x128xf32>
      tpu.vector_store %arg8[%c0_31, %c0_32], %48 {strides = array<i32>} : memref<8x128xf32, #tpu.memory_space<vmem>>, vector<8x128xf32>,
    } else {
    }
    return
  }
  func.func @transform_0(%arg0: i32, %arg1: i32) -> (i32, i32) {
    %c0_i32 = arith.constant 0 : i32
    %c0_i32_0 = arith.constant 0 : i32
    return %arg0, %c0_i32 : i32, i32
  }
  func.func @transform_1(%arg0: i32, %arg1: i32) -> (i32, i32, i32) {
    %c0_i32 = arith.constant 0 : i32
    %c0_i32_0 = arith.constant 0 : i32
    return %arg0, %arg1, %c0_i32 : i32, i32, i32
  }
  func.func @transform_2(%arg0: i32, %arg1: i32) -> (i32, i32) {
    %c0_i32 = arith.constant 0 : i32
    %c0_i32_0 = arith.constant 0 : i32
    %c0_i32_1 = arith.constant 0 : i32
    return %c0_i32, %c0_i32_0 : i32, i32
  }
  func.func @transform_3(%arg0: i32, %arg1: i32) -> (i32, i32) {
    %c0_i32 = arith.constant 0 : i32
    %c0_i32_0 = arith.constant 0 : i32
    %c0_i32_1 = arith.constant 0 : i32
    return %c0_i32, %c0_i32_0 : i32, i32
  }
  func.func @transform_4(%arg0: i32, %arg1: i32) -> (i32, i32) {
    %c0_i32 = arith.constant 0 : i32
    %c0_i32_0 = arith.constant 0 : i32
    %c0_i32_1 = arith.constant 0 : i32
    return %c0_i32, %c0_i32_0 : i32, i32
  }
  func.func @transform_5(%arg0: i32, %arg1: i32) -> (i32, i32) {
    %c0_i32 = arith.constant 0 : i32
    %c0_i32_0 = arith.constant 0 : i32
    %c0_i32_1 = arith.constant 0 : i32
    return %c0_i32, %c0_i32_0 : i32, i32
  }
  func.func @transform_6(%arg0: i32, %arg1: i32) -> (i32, i32) {
    %c0_i32 = arith.constant 0 : i32
    %c0_i32_0 = arith.constant 0 : i32
    return %arg0, %c0_i32 : i32, i32
  }
}

</mosaic_0001>

<llo_original>
// kernel: tpu_custom_call.1
$region0: #{tpu_custom_call.1}
  #allocation0 [shape = 'u32[]', space=smem, size = 0x4, offset = 0x4, fixed_abs, tag = 'smem constant byte address 0x4 - core index']
  #allocation1 [shape = 'u32[72,128]{1,0:T(1,128)}', space=vmem, size = 0x9000, scoped, tag = 'internal scratch']
  #allocation2 [shape = 'f32[8,32]{1,0:T(8,128)}', space=vmem, size = 0x1000, scoped, tag = 'scratch operand']
  #allocation3 [shape = 'f32[8,1]{1,0:T(8,128)}', space=vmem, size = 0x1000, scoped, tag = 'scratch operand']
  %s0 = inlined_call_operand.vmem [shape: s32[8,1], index: 0, kind: input, shape index: {}]
  %s1 = inlined_call_operand.hbm [shape: bf16[8,8,32], index: 1, kind: input, shape index: {}]
  %s2 = inlined_call_operand.hbm [shape: bf16[32,32], index: 2, kind: input, shape index: {}]
  %s3 = inlined_call_operand.vmem [shape: f32[1,32], index: 3, kind: input, shape index: {}]
  %s4 = inlined_call_operand.hbm [shape: bf16[32,128], index: 4, kind: input, shape index: {}]
  %s5 = inlined_call_operand.vmem [shape: f32[1,128], index: 5, kind: input, shape index: {}]
  %s6 = inlined_call_operand.hbm [shape: f32[8,128], index: 6, kind: output, shape index: {}]
  %s7 = sld [smem:[#allocation0]]
  $region54: #{tpu_custom_call.1} parent=0
    _
  %s9 = ssub.s32 1, %s7
  %s10 = scalar_select 0, %s9, %s7
  $region1: #{tpu_custom_call.1} parent=0
    #allocation4 [shape = 'u8[16384]{0}', space=vmem, size = 0x4000, scoped, tag = 'input window, operand 1, single buffered']
    #allocation5 [shape = 's32[1]{0}', space=sflag, size = 0x4, scoped, tag = 'scoped memory for tpu_custom_call.1']
    #allocation6 [shape = 's32[1]{0}', space=sflag, size = 0x4, scoped, tag = 'scoped memory for tpu_custom_call.1']
    #allocation7 [shape = 'u8[8192]{0}', space=vmem, size = 0x2000, scoped, tag = 'input window, operand 2, single buffered']
    #allocation8 [shape = 's32[1]{0}', space=sflag, size = 0x4, scoped, tag = 'scoped memory for tpu_custom_call.1']
    #allocation9 [shape = 'u8[8192]{0}', space=vmem, size = 0x2000, scoped, tag = 'input window, operand 4, single buffered']
    #allocation10 [shape = 'u8[4096]{0}', space=vmem, size = 0x1000, scoped, tag = 'output window, operand 0, single buffered']
    %11 = vsyncpa [#allocation5], 0
    %12 = vsyncpa [#allocation8], 0
    %13 = vsyncpa [#allocation6], 0
    // Predicated region
    $region2: #{tpu_custom_call.1} parent=1 // pred_check
      _
    $region3: #{tpu_custom_call.1} parent=1 // pred_check_branch
      %15 = sbr.rel (0) target = $region5
    $region4: #{tpu_custom_call.1} parent=1 // pred_region
      _
    $region5: #{tpu_custom_call.1} parent=1 // pred_fallthru
      _
    // Predicated region
    $region6: #{tpu_custom_call.1} parent=1 // pred_check
      _
    $region7: #{tpu_custom_call.1} parent=1 // pred_check_branch
      %17 = sbr.rel (0) target = $region9
    $region8: #{tpu_custom_call.1} parent=1 // pred_region
      %19 = vsyncadd [#allocation5], 0
      %s20 = sshll.u32 %s1, 4
      %s21 = int_to_ptr.hbm [resolvable:$true] %s20
      %s22 = sshll.u32 [#allocation4], 4
      %s23 = int_to_ptr.vmem [resolvable:$true] %s22
      %28 = dma.hbm_to_vmem [thread:$0]  %s21, 512, %s23, [#allocation5], 64, 64, 4
    $region9: #{tpu_custom_call.1} parent=1 // pred_fallthru
      _
    // Predicated region
    $region10: #{tpu_custom_call.1} parent=1 // pred_check
      _
    $region11: #{tpu_custom_call.1} parent=1 // pred_check_branch
      %30 = sbr.rel (0) target = $region13
    $region12: #{tpu_custom_call.1} parent=1 // pred_region
      %32 = vsyncadd [#allocation8], 0
      %s33 = sshll.u32 %s2, 4
      %s34 = int_to_ptr.hbm [resolvable:$true] %s33
      %s35 = sshll.u32 [#allocation7], 4
      %s36 = int_to_ptr.vmem [resolvable:$true] %s35
      %41 = dma.hbm_to_vmem [thread:$0]  %s34, 256, %s36, [#allocation8], 64, 64, 4
    $region13: #{tpu_custom_call.1} parent=1 // pred_fallthru
      _
    // Predicated region
    $region14: #{tpu_custom_call.1} parent=1 // pred_check
      _
    $region15: #{tpu_custom_call.1} parent=1 // pred_check_branch
      %43 = sbr.rel (0) target = $region17
    $region16: #{tpu_custom_call.1} parent=1 // pred_region
      _
    $region17: #{tpu_custom_call.1} parent=1 // pred_fallthru
      _
    // Predicated region
    $region18: #{tpu_custom_call.1} parent=1 // pred_check
      _
    $region19: #{tpu_custom_call.1} parent=1 // pred_check_branch
      %45 = sbr.rel (0) target = $region21
    $region20: #{tpu_custom_call.1} parent=1 // pred_region
      %47 = vsyncadd [#allocation8], 0
      %s48 = sshll.u32 %s4, 4
      %s49 = int_to_ptr.hbm [resolvable:$true] %s48
      %s50 = sshll.u32 [#allocation9], 4
      %s51 = int_to_ptr.vmem [resolvable:$true] %s50
      %56 = dma.hbm_to_vmem [thread:$0]  %s49, 256, %s51, [#allocation8], 64, 64, 4
    $region21: #{tpu_custom_call.1} parent=1 // pred_fallthru
      _
    // Predicated region
    $region22: #{tpu_custom_call.1} parent=1 // pred_check
      _
    $region23: #{tpu_custom_call.1} parent=1 // pred_check_branch
      %58 = sbr.rel (0) target = $region25
    $region24: #{tpu_custom_call.1} parent=1 // pred_region
      _
    $region25: #{tpu_custom_call.1} parent=1 // pred_fallthru
      _
    // Predicated region
    $region26: #{tpu_custom_call.1} parent=1 // pred_check
      _
    $region27: #{tpu_custom_call.1} parent=1 // pred_check_branch
      %60 = sbr.rel (0) target = $region29
    $region28: #{tpu_custom_call.1} parent=1 // pred_region
      %62 = dma.done [#allocation5], 512
    $region29: #{tpu_custom_call.1} parent=1 // pred_fallthru
      _
    // Predicated region
    $region30: #{tpu_custom_call.1} parent=1 // pred_check
      _
    $region31: #{tpu_custom_call.1} parent=1 // pred_check_branch
      %64 = sbr.rel (0) target = $region33
    $region32: #{tpu_custom_call.1} parent=1 // pred_region
      %66 = dma.done [#allocation8], 256
    $region33: #{tpu_custom_call.1} parent=1 // pred_fallthru
      _
    // Predicated region
    $region34: #{tpu_custom_call.1} parent=1 // pred_check
      _
    $region35: #{tpu_custom_call.1} parent=1 // pred_check_branch
      %68 = sbr.rel (0) target = $region37
    $region36: #{tpu_custom_call.1} parent=1 // pred_region
      %70 = dma.done [#allocation8], 256
    $region37: #{tpu_custom_call.1} parent=1 // pred_fallthru
      _
    %p72 = scmp.eq.s32.totalorder 0, 0
    // Predicated region
    $region38: #{tpu_custom_call.1} parent=1 // pred_check
      %p73 = pneg %p72
    $region39: #{tpu_custom_call.1} parent=1 // pred_check_branch
      %75 = sbr.rel (%p73) target = $region41
    $region40: #{tpu_custom_call.1} parent=1 // pred_region
      %vm76 = vcmask 261120
      %77 = vst.msk [vmem:[#allocation2] sm:$0xff] %vm76, 0.0
      %vm78 = vcmask 7168
      %79 = vst.msk [vmem:[#allocation3] sm:$0xff] %vm78, 0.0
    $region41: #{tpu_custom_call.1} parent=1 // pred_fallthru
      _
    %v80 = vlaneseq
    %v81 = vand.u32 %v80, 127
    %s82 = smul.u32 0, 8
    %v83 = vstv %s82
    %v84 = vadd.s32 %v81, %v83
    %v85 = vld [vmem:[%s0] sm:$0xff]
    %86 = vset.pattern.permute.xlu0 0
    %87 = vperm.xlu0 %86, %v85
    %v88 = vpop.permute.xlu0 %87
    %vm89 = vcmp.lt.s32.totalorder %v84, %v88
    %v90 = vsel %vm89, 1, 0
    %v91 = vcvt.s32.f32 %v90
    %v92 = vld [vmem:[#allocation4] sm:$0xf]
    %v93 = vld [vmem:[#allocation4 + $0x4] sm:$0xf]
    %v94 = vld [vmem:[#allocation4 + $0x8] sm:$0xf]
    %v95 = vld [vmem:[#allocation4 + $0xc] sm:$0xf]
    %v96 = vld [vmem:[#allocation4 + $0x10] sm:$0xf]
    %v97 = vld [vmem:[#allocation4 + $0x14] sm:$0xf]
    %v98 = vld [vmem:[#allocation4 + $0x18] sm:$0xf]
    %v99 = vld [vmem:[#allocation4 + $0x1c] sm:$0xf]
    %v100 = vunpack.c.l.bf16 %v92
    %v101 = vunpack.c.l.bf16 %v93
    %v102 = vunpack.c.l.bf16 %v94
    %v103 = vunpack.c.l.bf16 %v95
    %v104 = vunpack.c.l.bf16 %v96
    %v105 = vunpack.c.l.bf16 %v97
    %v106 = vunpack.c.l.bf16 %v98
    %v107 = vunpack.c.l.bf16 %v99
    %v108 = vld [vmem:[#allocation2] sm:$0xff]
    %v109 = vperm.slane %v91, 0
    %v110 = vlaneseq
    %v111 = vshrl.u32 %v110, 7
    %113 = vset.pattern.permute.xlu0 %v111
    %114 = vperm.xlu0 %113, %v109
    %v115 = vpop.permute.xlu0 %114
    %v116 = vperm.slane %v91, 1
    %v117 = vlaneseq
    %v118 = vshrl.u32 %v117, 7
    %120 = vset.pattern.permute.xlu0 %v118
    %121 = vperm.xlu0 %120, %v116
    %v122 = vpop.permute.xlu0 %121
    %v123 = vperm.slane %v91, 2
    %v124 = vlaneseq
    %v125 = vshrl.u32 %v124, 7
    %127 = vset.pattern.permute.xlu0 %v125
    %128 = vperm.xlu0 %127, %v123
    %v129 = vpop.permute.xlu0 %128
    %v130 = vperm.slane %v91, 3
    %v131 = vlaneseq
    %v132 = vshrl.u32 %v131, 7
    %134 = vset.pattern.permute.xlu0 %v132
    %135 = vperm.xlu0 %134, %v130
    %v136 = vpop.permute.xlu0 %135
    %v137 = vperm.slane %v91, 4
    %v138 = vlaneseq
    %v139 = vshrl.u32 %v138, 7
    %141 = vset.pattern.permute.xlu0 %v139
    %142 = vperm.xlu0 %141, %v137
    %v143 = vpop.permute.xlu0 %142
    %v144 = vperm.slane %v91, 5
    %v145 = vlaneseq
    %v146 = vshrl.u32 %v145, 7
    %148 = vset.pattern.permute.xlu0 %v146
    %149 = vperm.xlu0 %148, %v144
    %v150 = vpop.permute.xlu0 %149
    %v151 = vperm.slane %v91, 6
    %v152 = vlaneseq
    %v153 = vshrl.u32 %v152, 7
    %155 = vset.pattern.permute.xlu0 %v153
    %156 = vperm.xlu0 %155, %v151
    %v157 = vpop.permute.xlu0 %156
    %v158 = vperm.slane %v91, 7
    %v159 = vlaneseq
    %v160 = vshrl.u32 %v159, 7
    %162 = vset.pattern.permute.xlu0 %v160
    %163 = vperm.xlu0 %162, %v158
    %v164 = vpop.permute.xlu0 %163
    %v165 = vmul.f32 %v100, %v115
    %v166 = vmul.f32 %v101, %v122
    %v167 = vmul.f32 %v102, %v129
    %v168 = vmul.f32 %v103, %v136
    %v169 = vmul.f32 %v104, %v143
    %v170 = vmul.f32 %v105, %v150
    %v171 = vmul.f32 %v106, %v157
    %v172 = vmul.f32 %v107, %v164
    %vm173 = vcmask 261120
    %v174 = vsel %vm173, %v165, 0.0
    %v175 = vrot.slane %v174, 4
    %v176 = vadd.f32 %v174, %v175
    %v177 = vrot.slane %v176, 2
    %v178 = vadd.f32 %v176, %v177
    %v179 = vrot.slane %v178, 1
    %v180 = vadd.f32 %v178, %v179
    %v181 = vsel %vm173, %v166, 0.0
    %v182 = vrot.slane %v181, 4
    %v183 = vadd.f32 %v181, %v182
    %v184 = vrot.slane %v183, 2
    %v185 = vadd.f32 %v183, %v184
    %v186 = vrot.slane %v185, 1
    %v187 = vadd.f32 %v185, %v186
    %v188 = vsel %vm173, %v167, 0.0
    %v189 = vrot.slane %v188, 4
    %v190 = vadd.f32 %v188, %v189
    %v191 = vrot.slane %v190, 2
    %v192 = vadd.f32 %v190, %v191
    %v193 = vrot.slane %v192, 1
    %v194 = vadd.f32 %v192, %v193
    %v195 = vsel %vm173, %v168, 0.0
    %v196 = vrot.slane %v195, 4
    %v197 = vadd.f32 %v195, %v196
    %v198 = vrot.slane %v197, 2
    %v199 = vadd.f32 %v197, %v198
    %v200 = vrot.slane %v199, 1
    %v201 = vadd.f32 %v199, %v200
    %v202 = vsel %vm173, %v169, 0.0
    %v203 = vrot.slane %v202, 4
    %v204 = vadd.f32 %v202, %v203
    %v205 = vrot.slane %v204, 2
    %v206 = vadd.f32 %v204, %v205
    %v207 = vrot.slane %v206, 1
    %v208 = vadd.f32 %v206, %v207
    %v209 = vsel %vm173, %v170, 0.0
    %v210 = vrot.slane %v209, 4
    %v211 = vadd.f32 %v209, %v210
    %v212 = vrot.slane %v211, 2
    %v213 = vadd.f32 %v211, %v212
    %v214 = vrot.slane %v213, 1
    %v215 = vadd.f32 %v213, %v214
    %v216 = vsel %vm173, %v171, 0.0
    %v217 = vrot.slane %v216, 4
    %v218 = vadd.f32 %v216, %v217
    %v219 = vrot.slane %v218, 2
    %v220 = vadd.f32 %v218, %v219
    %v221 = vrot.slane %v220, 1
    %v222 = vadd.f32 %v220, %v221
    %v223 = vsel %vm173, %v172, 0.0
    %v224 = vrot.slane %v223, 4
    %v225 = vadd.f32 %v223, %v224
    %v226 = vrot.slane %v225, 2
    %v227 = vadd.f32 %v225, %v226
    %v228 = vrot.slane %v227, 1
    %v229 = vadd.f32 %v227, %v228
    %vm238 = vcmask 1041409
    %v239 = vsel %vm238, %v187, %v180
    %vm240 = vcmask 1042434
    %v241 = vsel %vm240, %v194, %v239
    %vm242 = vcmask 1043459
    %v243 = vsel %vm242, %v201, %v241
    %vm244 = vcmask 1044484
    %v245 = vsel %vm244, %v208, %v243
    %vm246 = vcmask 1045509
    %v247 = vsel %vm246, %v215, %v245
    %vm248 = vcmask 1046534
    %v249 = vsel %vm248, %v222, %v247
    %vm250 = vcmask 1047559
    %v251 = vsel %vm250, %v229, %v249
    %v253 = vadd.f32 %v108, %v251
    %254 = vst.msk [vmem:[#allocation2] sm:$0xff] %vm173, %v253
    %v255 = vld [vmem:[#allocation3] sm:$0xff]
    %vm256 = vcmask 64512
    %v257 = vsel %vm256, %v91, 0.0
    %258 = vadd.xlane.f32.xlu0 %v257
    %v259 = vpop.xlane.xlu0 %258
    %v260 = vadd.f32 %v255, %v259
    %vm261 = vcmask 7168
    %262 = vst.msk [vmem:[#allocation3] sm:$0xff] %vm261, %v260
    // Predicated region
    $region42: #{tpu_custom_call.1} parent=1 // pred_check
      %p263 = pneg %p72
    $region43: #{tpu_custom_call.1} parent=1 // pred_check_branch
      %265 = sbr.rel (%p263) target = $region45
    $region44: #{tpu_custom_call.1} parent=1 // pred_region
      %v266 = vld [vmem:[#allocation3] sm:$0xff]
      %v267 = vmax.f32 %v266, 1.0
      %v268 = vld [vmem:[#allocation2] sm:$0xff]
      %v269 = vrcp.pop %v267
      %271 = vset.pattern.permute.xlu0 0
      %272 = vperm.xlu0 %271, %v269
      %v273 = vpop.permute.xlu0 %272
      %v275 = vmul.f32 %v268, %v273
      %v276 = vpack.c.bf16 %v275, %v275
      %v277 = vld [vmem:[#allocation7] sm:$0xf]
      %v278 = vld [vmem:[#allocation7 + $0x4] sm:$0xf]
      %v279 = vld [vmem:[#allocation7 + $0x8] sm:$0xf]
      %v280 = vld [vmem:[#allocation7 + $0xc] sm:$0xf]
      %v281 = vld [vmem:[%s3] sm:$0x1]
      %v283 = vperm.slane %v281, 0
      %v289 = vunpack.c.l.b16 %v277
      %v290 = vunpack.c.l.b16 %v278
      %v291 = vunpack.c.l.b16 %v279
      %v292 = vunpack.c.l.b16 %v280
      %v293 = vpack.c.b16 %v290, %v289
      %v294 = vpack.c.b16 %v292, %v291
      %v298 = vsel %vm173, %v276, 0
      %300 = vmatpush.bf16.msra.mxu0 0
      %301 = vmatpush.bf16.msra.mxu0 0
      %302 = vmatpush.bf16.msra.mxu0 0
      %303 = vmatpush.bf16.msra.mxu0 0
      %304 = vmatpush.bf16.msra.mxu0 0
      %305 = vmatpush.bf16.msra.mxu0 0
      %306 = vmatpush.bf16.msra.mxu0 %v294
      %307 = vmatpush.bf16.msra.mxu0 %v293
      %308 = vmatmul.bf16.gmra.mxu0 %v298
      %v309 = vpop.f32.mrf.mxu0
      %v310 = vadd.f32 %v283, %v309
      %v311 = vpop.f32.mrf.mxu0
      %312 = vdwg.mxu0
      %v313 = vtanh.pop %v310
      %v314 = vpack.c.bf16 %v313, %v313
      %v315 = vld [vmem:[#allocation9] sm:$0xf]
      %v316 = vld [vmem:[#allocation9 + $0x4] sm:$0xf]
      %v317 = vld [vmem:[#allocation9 + $0x8] sm:$0xf]
      %v318 = vld [vmem:[#allocation9 + $0xc] sm:$0xf]
      %v319 = vld [vmem:[%s5] sm:$0x1]
      %v321 = vperm.slane %v319, 0
      %v327 = vunpack.c.l.b16 %v315
      %v328 = vunpack.c.l.b16 %v316
      %v329 = vunpack.c.l.b16 %v317
      %v330 = vunpack.c.l.b16 %v318
      %v331 = vpack.c.b16 %v328, %v327
      %v332 = vpack.c.b16 %v330, %v329
      %v336 = vsel %vm173, %v314, 0
      %338 = vmatpush.bf16.msra.mxu0 0
      %339 = vmatpush.bf16.msra.mxu0 0
      %340 = vmatpush.bf16.msra.mxu0 0
      %341 = vmatpush.bf16.msra.mxu0 0
      %342 = vmatpush.bf16.msra.mxu0 0
      %343 = vmatpush.bf16.msra.mxu0 0
      %344 = vmatpush.bf16.msra.mxu0 %v332
      %345 = vmatpush.bf16.msra.mxu0 %v331
      %346 = vmatmul.bf16.gmra.mxu0 %v336
      %v347 = vpop.f32.mrf.mxu0
      %v348 = vadd.f32 %v321, %v347
      %v349 = vpop.f32.mrf.mxu0
      %350 = vdwg.mxu0
      %351 = vst [vmem:[#allocation10] sm:$0xff] %v348
    $region45: #{tpu_custom_call.1} parent=1 // pred_fallthru
      _
    // Predicated region
    $region46: #{tpu_custom_call.1} parent=1 // pred_check
      _
    $region47: #{tpu_custom_call.1} parent=1 // pred_check_branch
      %353 = sbr.rel (0) target = $region49
    $region48: #{tpu_custom_call.1} parent=1 // pred_region
      %355 = vsyncadd [#allocation6], 0
      %s357 = sshll.u32 [#allocation10], 4
      %s358 = int_to_ptr.vmem [resolvable:$true] %s357
      %s359 = sshll.u32 %s6, 4
      %s360 = int_to_ptr.hbm [resolvable:$true] %s359
      %362 = dma.vmem_to_hbm [thread:$0]  %s358, 128, %s360, [#allocation6]
    $region49: #{tpu_custom_call.1} parent=1 // pred_fallthru
      _
    // Predicated region
    $region50: #{tpu_custom_call.1} parent=1 // pred_check
      _
    $region51: #{tpu_custom_call.1} parent=1 // pred_check_branch
      %364 = sbr.rel (0) target = $region53
    $region52: #{tpu_custom_call.1} parent=1 // pred_region
      %366 = dma.done [#allocation6], 128
    $region53: #{tpu_custom_call.1} parent=1 // pred_fallthru
      _
    %367 = vsyncpa [#allocation5], 1
    %368 = vsyncpa [#allocation8], 1
    %369 = vsyncpa [#allocation6], 1

</llo_original>
